<compile_context>
chip_gen: v5e
topology: v5e:2x2
jax: 0.10.0
libtpu: 0.0.40
codegen_flags: <defaults>
</compile_context>

<pallas_src>
import functools
import math

import jax
import jax.numpy as jnp
from jax.experimental import pallas as pl
from jax.experimental.pallas import tpu as pltpu


def _round_up(x, m):
    return ((x + m - 1) // m) * m


def _vmem_cap_bytes():
    """Physical-VMEM-aware ceiling for vmem_limit_bytes (leaves compiler headroom)."""
    try:
        cap = int(pltpu.get_tpu_info().vmem_capacity_bytes)
    except Exception:
        cap = 128 << 20          # v5e/v6e physical size if the query is unavailable
    return max(cap - (16 << 20), 32 << 20)


# --------------------- projection kernel: y = x @ W1 (BN folded) ------------ #

def _proj_kernel(x_ref, w_ref, o_ref):
    # bf16 x bf16 -> f32 accumulate on the MXU; emit bf16 for the aggregation.
    o_ref[...] = jnp.dot(x_ref[...].astype(jnp.bfloat16), w_ref[...],
                         preferred_element_type=jnp.float32).astype(o_ref.dtype)


def project(x, w_bf16, *, tm):
    """y = x @ W1 (eval BatchNorm scale already folded into W1).  Output bf16."""
    n_pad, din = x.shape
    hid = w_bf16.shape[1]
    assert n_pad % tm == 0
    return pl.pallas_call(
        _proj_kernel,
        out_shape=jax.ShapeDtypeStruct((n_pad, hid), jnp.bfloat16),
        grid_spec=pltpu.PrefetchScalarGridSpec(
            num_scalar_prefetch=0,
            grid=(n_pad // tm,),
            in_specs=[
                pl.BlockSpec((tm, din), lambda i: (i, 0)),    # node rows
                pl.BlockSpec((din, hid), lambda i: (0, 0)),   # W1 (resident)
            ],
            out_specs=pl.BlockSpec((tm, hid), lambda i: (i, 0)),
        ),
        compiler_params=pltpu.CompilerParams(
            dimension_semantics=("parallel",)),
    )(x, w_bf16)


# -------------- aggregation + MLP-epilogue kernel (one GIN layer) ----------- #

def _gin_agg_kernel(a_ref, y_ref, b1_ref, w2_ref, b2_ref, o_ref, acc_ref,
                    *, tk, resident_y, apply_act):
    """out = act( ReLU( (A' @ y) + b1 ) @ W2 + b2 ) for one row block of nodes.

    grid = (node row blocks [parallel], K blocks of the contraction [arbitrary])
      a_ref : (tm, tk)            bf16  block of A' = A + (1+eps) * I
      y_ref : (n_pad, hid) bf16 (resident)  or  (tk, hid) bf16 (streamed)
      b1/b2 : (1, hid)/(1, dout)  f32   (eval BatchNorm folded into b1)
      w2    : (hid, dout)         bf16
      o_ref : (tm, dout)          bf16 (intermediate layers) or f32 (last layer)
      acc   : (tm, hid)           f32 VMEM accumulator for A' @ y
    """
    k = pl.program_id(1)

    @pl.when(k == 0)
    def _():
        acc_ref[...] = jnp.zeros_like(acc_ref)

    if resident_y:
        off = pl.multiple_of(k * tk, 128)
        yk = y_ref[pl.ds(off, tk), :]
    else:
        yk = y_ref[...]
    # sum aggregation + (1+eps)*self (folded into A' diagonal), f32 accumulate
    acc_ref[...] += jnp.dot(a_ref[...], yk, preferred_element_type=jnp.float32)

    @pl.when(k == pl.num_programs(1) - 1)
    def _():
        # GINConv MLP tail: (+ folded BN bias) -> ReLU -> Linear, then encoder act.
        z = jnp.maximum(acc_ref[...] + b1_ref[...], 0.0)
        out = jnp.dot(z.astype(jnp.bfloat16), w2_ref[...],
                      preferred_element_type=jnp.float32) + b2_ref[...]
        if apply_act:
            out = jnp.maximum(out, 0.0)       # encoder activation ('relu')
        o_ref[...] = out.astype(o_ref.dtype)


def gin_aggregate(a_bf16, y_bf16, b1, w2_bf16, b2, *, apply_act, tm, tk, out_dtype):
    n_pad = a_bf16.shape[0]
    hid = y_bf16.shape[1]
    dout = w2_bf16.shape[1]
    assert n_pad % tm == 0 and n_pad % tk == 0
    nk = n_pad // tk

    # Keep the projected features fully VMEM-resident across the whole grid when
    # they fit (fetched once); otherwise stream (tk, hid) blocks per K step.
    resident_y = nk > 1 and (2 * n_pad * hid * 2) <= (16 << 20)
    if resident_y:
        y_spec = pl.BlockSpec((n_pad, hid), lambda i, k: (0, 0))
        y_bytes = 2 * n_pad * hid * 2
    else:
        y_spec = pl.BlockSpec((tk, hid), lambda i, k: (k, 0))
        y_bytes = 2 * tk * hid * 2

    out_isz = jnp.dtype(out_dtype).itemsize
    vmem_bytes = (2 * tm * tk * 2                                # A' blocks (bf16)
                  + y_bytes                                      # projected features
                  + 2 * (hid * 4 + hid * dout * 2 + dout * 4)    # b1, W2, b2
                  + 2 * tm * dout * out_isz                      # output blocks
                  + tm * hid * 4)                                # accumulator
    vmem_limit = int(min(max(vmem_bytes + (8 << 20), 32 << 20), _vmem_cap_bytes()))

    kernel = functools.partial(_gin_agg_kernel, tk=tk,
                               resident_y=resident_y, apply_act=bool(apply_act))
    return pl.pallas_call(
        kernel,
        out_shape=jax.ShapeDtypeStruct((n_pad, dout), out_dtype),
        grid_spec=pltpu.PrefetchScalarGridSpec(
            num_scalar_prefetch=0,
            grid=(n_pad // tm, nk),
            in_specs=[
                pl.BlockSpec((tm, tk), lambda i, k: (i, k)),     # A' block
                y_spec,                                          # y = x @ W1
                pl.BlockSpec((1, hid), lambda i, k: (0, 0)),     # b1 (BN folded)
                pl.BlockSpec((hid, dout), lambda i, k: (0, 0)),  # W2
                pl.BlockSpec((1, dout), lambda i, k: (0, 0)),    # b2
            ],
            out_specs=pl.BlockSpec((tm, dout), lambda i, k: (i, 0)),
            scratch_shapes=[pltpu.VMEM((tm, hid), jnp.float32)],
        ),
        compiler_params=pltpu.CompilerParams(
            dimension_semantics=("parallel", "arbitrary"),
            vmem_limit_bytes=vmem_limit),
    )(a_bf16, y_bf16, b1, w2_bf16, b2)


# ------------------------------ glue (JAX) ---------------------------------- #

def _choose_tiles(n):
    """Node padding + tiles.  n_pad % 128 == 0, tm | n_pad, tk | n_pad, and the
    node axis always has >= 2 row blocks so v7x's two TensorCores share work."""
    if n <= 2048:
        n_pad = _round_up(max(n, 128), 128)
        tm = n_pad // 2              # multiple of 64 -> (16,128) bf16 aligned
        tk = n_pad                   # single K step; A' row block fully resident
        return n_pad, tm, tk
    n_pad = _round_up(n, 2048)
    return n_pad, 1024, 2048


def build_gin_adj(edge_index, num_nodes, n_pad, eps=0.0):
    """Dense GIN aggregation matrix A'[i, j] = #edges j->i, plus (1+eps) on diag.

    Entries are small integers (+ 1+eps), exactly representable in bf16, so the
    bf16 cast costs no accuracy while halving the dominant HBM traffic."""
    src, dst = edge_index[0], edge_index[1]
    a = jnp.zeros((n_pad, n_pad), jnp.float32)
    a = a.at[dst, src].add(1.0)
    idx = jnp.arange(num_nodes)
    a = a.at[idx, idx].add(1.0 + eps)
    return a.astype(jnp.bfloat16)


def _linear_init(key, fan_in, fan_out):
    limit = 1.0 / math.sqrt(fan_in)
    return jax.random.uniform(key, (fan_in, fan_out), jnp.float32, -limit, limit)


def _bias_init(key, fan_in, fan_out):
    limit = 1.0 / math.sqrt(fan_in)
    return jax.random.uniform(key, (fan_out,), jnp.float32, -limit, limit)


class GINEncoderPallas:
    """Mirrors GIN_Encoder(norm='id', activation='relu'), eval-mode BN/dropout."""

    def __init__(self, input_dim, layer_num=2, hidden_size=128, output_dim=128,
                 eps=0.0, last_activation=True, key=None):
        self.layer_num = layer_num
        self.eps = eps
        self.last_act = last_activation

        # per-layer GINConv MLP dims (din, hidden, dout), following __init__
        if layer_num > 1:
            mlp_dims = [(input_dim, hidden_size, hidden_size)]
            mlp_dims += [(hidden_size, hidden_size, hidden_size)] * (layer_num - 2)
            mlp_dims += [(hidden_size, hidden_size, output_dim)]
        else:
            mlp_dims = [(input_dim, hidden_size, hidden_size)]

        if key is None:
            key = jax.random.PRNGKey(0)

        bn_eps = 1e-5
        # eval-mode BatchNorm1d (running mean=0, var=1, gamma=1, beta=0)
        # -> per-channel scale folded into W1/b1.
        bn_scale = 1.0 / math.sqrt(1.0 + bn_eps)

        self.params = []
        for (din, hid, dout) in mlp_dims:
            key, k1, k2, k3, k4 = jax.random.split(key, 5)
            w1 = (_linear_init(k1, din, hid) * bn_scale).astype(jnp.bfloat16)
            b1 = (_bias_init(k2, din, hid) * bn_scale).reshape(1, hid)
            w2 = _linear_init(k3, hid, dout).astype(jnp.bfloat16)
            b2 = _bias_init(k4, hid, dout).reshape(1, dout)
            self.params.append((w1, b1, w2, b2))

    def __call__(self, x, edge_index):
        n = x.shape[0]
        n_pad, tm, tk = _choose_tiles(n)

        a = build_gin_adj(edge_index, n, n_pad, self.eps)   # bf16, built once

        h = x.astype(jnp.float32)
        if n_pad != n:
            h = jnp.pad(h, ((0, n_pad - n), (0, 0)))

        trace = []
        n_layers = len(self.params)
        for i, (w1, b1, w2, b2) in enumerate(self.params):
            last = (i == n_layers - 1)
            apply_act = not (i == self.layer_num - 1 and not self.last_act)
            y = project(h, w1, tm=tm)                       # y = x @ W1 (bf16)
            h = gin_aggregate(a, y, b1, w2, b2, apply_act=apply_act,
                              tm=tm, tk=tk,
                              out_dtype=jnp.float32 if last else jnp.bfloat16)
            # norm='id' -> identity; dropout treated in eval mode -> identity
            trace.append(h[:n])
        out = h[:n]
        return out, jnp.stack([t.astype(jnp.float32) for t in trace], axis=0)


# --------------------------------- main -------------------------------------- #

if __name__ == "__main__":
    key = jax.random.PRNGKey(0)
    k_x, k_e, k_w = jax.random.split(key, 3)

    N = 128          # nodes
    D_IN = 128       # input_dim
    HIDDEN = 128     # hidden_size
    D_OUT = 128      # output_dim
    E = 512          # edges
    LAYERS = 2

    x = jax.random.normal(k_x, (N, D_IN), jnp.float32)
    edge_index = jax.random.randint(k_e, (2, E), 0, N, jnp.int32)

    enc = GINEncoderPallas(input_dim=D_IN, layer_num=LAYERS, hidden_size=HIDDEN,
                           output_dim=D_OUT, eps=0.0, last_activation=True,
                           key=k_w)

    out, trace = enc(x, edge_index)
    out = jax.block_until_ready(out)
    trace = jax.block_until_ready(trace)

    assert out.shape == (N, D_OUT)
    assert trace.shape == (LAYERS, N, D_OUT)
    assert bool(jnp.all(jnp.isfinite(out)))
    assert bool(jnp.all(jnp.isfinite(trace)))

    # Loose numerical sanity check vs a pure-JAX reference with the same
    # (bf16-quantized) weights and dense A'; kernels use bf16 MXU operands with
    # f32 accumulation, so allow a few percent drift relative to the max value.
    n_pad, _, _ = _choose_tiles(N)
    a_f32 = build_gin_adj(edge_index, N, n_pad, 0.0).astype(jnp.float32)
    h_ref = jnp.pad(x, ((0, n_pad - N), (0, 0))) if n_pad != N else x
    for (w1, b1, w2, b2) in enc.params:
        hmat = a_f32 @ (h_ref @ w1.astype(jnp.float32))
        z = jnp.maximum(hmat + b1, 0.0)
        h_ref = jnp.maximum(z @ w2.astype(jnp.float32) + b2, 0.0)
    ref = h_ref[:N]
    err = float(jnp.max(jnp.abs(out - ref)) / (jnp.max(jnp.abs(ref)) + 1e-6))
    assert err < 0.1, f"numerical drift vs reference too large: {err}"

    print("KERNEL_OK")
</pallas_src>

<mosaic_0001>
module attributes {stable_mosaic.version = 11 : i64} {
  func.func @_proj_kernel(%arg0: i32, %arg1: memref<64x128xf32, #tpu.memory_space<vmem>>, %arg2: memref<128x128xbf16, #tpu.memory_space<vmem>>, %arg3: memref<64x128xbf16, #tpu.memory_space<vmem>>) attributes {dimension_semantics = [#tpu.dimension_semantics<parallel>], iteration_bounds = array<i64: 2>, scalar_prefetch = 0 : i64, scratch_operands = 0 : i64, tpu.core_type = #tpu.core_type<tc>, window_params = [{transform_indices = @transform_0, window_bounds = array<i64: 64, 128>}, {pipeline_mode = #tpu.pipeline_mode<synchronous>, transform_indices = @transform_1, window_bounds = array<i64: 128, 128>}, {transform_indices = @transform_2, window_bounds = array<i64: 64, 128>}]} {
    %c0 = arith.constant 0 : index
    %c0_0 = arith.constant 0 : index
    %0 = vector.load %arg1[%c0, %c0_0] : memref<64x128xf32, #tpu.memory_space<vmem>>, vector<64x128xf32>
    %1 = arith.truncf %0 : vector<64x128xf32> to vector<64x128xbf16>
    %c0_1 = arith.constant 0 : index
    %c0_2 = arith.constant 0 : index
    %2 = vector.load %arg2[%c0_1, %c0_2] : memref<128x128xbf16, #tpu.memory_space<vmem>>, vector<128x128xbf16>
    %cst = arith.constant dense<0.000000e+00> : vector<64x128xf32>
    %3 = tpu.matmul %1, %2, %cst {dimension_numbers = #tpu.dot_dimension_numbers<[1], [0], [0], [1], [0, 0, 1, 1], [], []>} : vector<64x128xbf16>, vector<128x128xbf16>, vector<64x128xf32> -> vector<64x128xf32>
    %4 = arith.truncf %3 : vector<64x128xf32> to vector<64x128xbf16>
    %c0_3 = arith.constant 0 : index
    %c0_4 = arith.constant 0 : index
    %5 = vector.load %arg3[%c0_3, %c0_4] : memref<64x128xbf16, #tpu.memory_space<vmem>>, vector<64x128xbf16>
    tpu.vector_store %arg3[%c0_3, %c0_4], %4 {strides = array<i32>} : memref<64x128xbf16, #tpu.memory_space<vmem>>, vector<64x128xbf16>,
    return
  }
  func.func @transform_0(%arg0: i32) -> (i32, i32) {
    %c0_i32 = arith.constant 0 : i32
    %c0_i32_0 = arith.constant 0 : i32
    return %arg0, %c0_i32 : i32, i32
  }
  func.func @transform_1(%arg0: i32) -> (i32, i32) {
    %c0_i32 = arith.constant 0 : i32
    %c0_i32_0 = arith.constant 0 : i32
    %c0_i32_1 = arith.constant 0 : i32
    return %c0_i32, %c0_i32_0 : i32, i32
  }
  func.func @transform_2(%arg0: i32) -> (i32, i32) {
    %c0_i32 = arith.constant 0 : i32
    %c0_i32_0 = arith.constant 0 : i32
    return %arg0, %c0_i32 : i32, i32
  }
}

</mosaic_0001>

<llo_original>
// kernel: tpu_custom_call.1
$region0: #{tpu_custom_call.1}
  #allocation0 [shape = 'u32[]', space=smem, size = 0x4, offset = 0x4, fixed_abs, tag = 'smem constant byte address 0x4 - core index']
  #allocation1 [shape = 'u32[72,128]{1,0:T(1,128)}', space=vmem, size = 0x9000, scoped, tag = 'internal scratch']
  %s0 = inlined_call_operand.hbm [shape: f32[128,128], index: 0, kind: input, shape index: {}]
  %s1 = inlined_call_operand.hbm [shape: bf16[128,128], index: 1, kind: input, shape index: {}]
  %s2 = inlined_call_operand.hbm [shape: bf16[128,128], index: 2, kind: output, shape index: {}]
  %s3 = sld [smem:[#allocation0]]
  $region49: #{tpu_custom_call.1} parent=0
    _
  %s5 = ssub.s32 1, %s3
  %s6 = scalar_select 0, %s5, %s3
  $region1: #{tpu_custom_call.1} parent=0
    #allocation2 [shape = 'u8[65536]{0}', space=vmem, size = 0x10000, scoped, tag = 'input window, operand 0']
    #allocation3 [shape = 's32[2]{0}', space=sflag, size = 0x8, scoped, tag = 'scoped memory for tpu_custom_call.1']
    #allocation4 [shape = 's32[2]{0}', space=sflag, size = 0x8, scoped, tag = 'scoped memory for tpu_custom_call.1']
    #allocation5 [shape = 'u8[32768]{0}', space=vmem, size = 0x8000, scoped, tag = 'input window, operand 1, single buffered']
    #allocation6 [shape = 's32[1]{0}', space=sflag, size = 0x4, scoped, tag = 'scoped memory for tpu_custom_call.1']
    #allocation7 [shape = 'u8[32768]{0}', space=vmem, size = 0x8000, scoped, tag = 'output window, operand 0']
    %7 = vsyncpa [#allocation3], 0
    %s8 = scalar_lea.sflag [#allocation3], 1
    %9 = vsyncpa %s8, 0
    %10 = vsyncpa [#allocation6], 0
    %11 = vsyncpa [#allocation4], 0
    %s12 = scalar_lea.sflag [#allocation4], 1
    %13 = vsyncpa %s12, 0
    loop: start=0, step=1, limit=4
    $region2: #{tpu_custom_call.1} parent=1 // loop_pre_header
      _
    $region3: #{tpu_custom_call.1} parent=1 // loop_header
      %s15 = sphi 0, %s19
      %p16 = scmp.ge.s32.totalorder %s15, 4
      %s25 = sphi 0, %s27
      %s28 = sphi 0, %s25
      %s29 = sphi 0, %s28
      %s45 = sphi 0, %s29
      %s49 = sphi 0, %s49
      %s51 = sphi 0, %s49
      %s52 = sphi 0, %s51
      %s66 = sphi 0, %s52
      %s72 = sphi 0, %s74
      %s75 = sphi 0, %s72
      %s76 = sphi 0, %s75
      %s92 = sphi 0, %s76
    $region4: #{tpu_custom_call.1} parent=1 // loop_header_branch
      %18 = sbr.rel (%p16) target = $region8
    $region5: #{tpu_custom_call.1} parent=1 // loop_body
      %s20 = ssub.s32 %s15, 1
      %s21 = ssub.s32 %s15, 2
      %s22 = sadd.s32 %s15, 1
      %s23 = ssub.s32 %s15, %s22
      %p24 = scmp.eq.s32.totalorder %s23, 0
      %s26 = sadd.s32 %s25, 1
      %s27 = scalar_select %p24, %s25, %s26
      %p30 = pneg %p24
      %p31 = scmp.eq.s32.totalorder %s15, 1
      %p32 = por %p30, %p31
      %p33 = scmp.ne.s32.totalorder %s25, %s28
      %p34 = scmp.eq.s32.totalorder %s15, 0
      %p35 = por %p33, %p34
      %p36 = scmp.ne.s32.totalorder %s25, %s28
      %p37 = scmp.eq.s32.totalorder %s20, 1
      %p38 = por %p36, %p37
      %p39 = scmp.ne.s32.totalorder %s28, %s29
      %p40 = scmp.eq.s32.totalorder %s20, 0
      %p41 = por %p39, %p40
      %p42 = scmp.ne.s32.totalorder %s28, %s29
      %p43 = scmp.eq.s32.totalorder %s21, 1
      %p44 = por %p42, %p43
      %p46 = scmp.ne.s32.totalorder %s29, %s45
      %p47 = scmp.eq.s32.totalorder %s21, 0
      %p48 = por %p46, %p47
      %s50 = sadd.s32 %s49, 1
      %p53 = scmp.eq.s32.totalorder %s15, 1
      %p54 = scmp.ne.s32.totalorder %s49, %s51
      %p55 = scmp.eq.s32.totalorder %s15, 0
      %p56 = por %p54, %p55
      %p57 = scmp.ne.s32.totalorder %s49, %s51
      %p58 = scmp.eq.s32.totalorder %s20, 1
      %p59 = por %p57, %p58
      %p60 = scmp.ne.s32.totalorder %s51, %s52
      %p61 = scmp.eq.s32.totalorder %s20, 0
      %p62 = por %p60, %p61
      %p63 = scmp.ne.s32.totalorder %s51, %s52
      %p64 = scmp.eq.s32.totalorder %s21, 1
      %p65 = por %p63, %p64
      %p67 = scmp.ne.s32.totalorder %s52, %s66
      %p68 = scmp.eq.s32.totalorder %s21, 0
      %p69 = por %p67, %p68
      %s70 = ssub.s32 %s15, %s22
      %p71 = scmp.eq.s32.totalorder %s70, 0
      %s73 = sadd.s32 %s72, 1
      %s74 = scalar_select %p71, %s72, %s73
      %p77 = pneg %p71
      %p78 = scmp.eq.s32.totalorder %s15, 1
      %p79 = por %p77, %p78
      %p80 = scmp.ne.s32.totalorder %s72, %s75
      %p81 = scmp.eq.s32.totalorder %s15, 0
      %p82 = por %p80, %p81
      %p83 = scmp.ne.s32.totalorder %s72, %s75
      %p84 = scmp.eq.s32.totalorder %s20, 1
      %p85 = por %p83, %p84
      %p86 = scmp.ne.s32.totalorder %s75, %s76
      %p87 = scmp.eq.s32.totalorder %s20, 0
      %p88 = por %p86, %p87
      %p89 = scmp.ne.s32.totalorder %s75, %s76
      %p90 = scmp.eq.s32.totalorder %s21, 1
      %p91 = por %p89, %p90
      %p93 = scmp.ne.s32.totalorder %s76, %s92
      %p94 = scmp.eq.s32.totalorder %s21, 0
      %p95 = por %p93, %p94
      %p96 = scmp.le.s32.totalorder 1, %s15
      %p97 = scmp.lt.s32.totalorder %s15, 3
      %p98 = pnand %p96, %p97
      %p99 = pneg %p98
      // Predicated region
      $region9: #{tpu_custom_call.1} parent=5 // pred_check
        _
      $region10: #{tpu_custom_call.1} parent=5 // pred_check_branch
        %101 = sbr.rel (%p98) target = $region12
      $region11: #{tpu_custom_call.1} parent=5 // pred_region
        %s102 = ssub.s32 %s15, 1
        // Predicated region
        $region13: #{tpu_custom_call.1} parent=11 // pred_check
          %p103 = pneg %p62
        $region14: #{tpu_custom_call.1} parent=11 // pred_check_branch
          %105 = sbr.rel (%p103) target = $region16
        $region15: #{tpu_custom_call.1} parent=11 // pred_region
          %107 = vsyncadd [#allocation6], 0
          %s108 = sshll.u32 %s1, 4
          %s109 = int_to_ptr.hbm [resolvable:$true] %s108
          %s110 = sshll.u32 [#allocation5], 4
          %s111 = int_to_ptr.vmem [resolvable:$true] %s110
          %116 = dma.hbm_to_vmem [thread:$0]  %s109, 1024, %s111, [#allocation6], 64, 64, 4
        $region16: #{tpu_custom_call.1} parent=11 // pred_fallthru
          _
      $region12: #{tpu_custom_call.1} parent=5 // pred_fallthru
        _
      %p117 = scmp.lt.s32.totalorder %s15, 2
      // Predicated region
      $region17: #{tpu_custom_call.1} parent=5 // pred_check
        %p118 = pneg %p117
      $region18: #{tpu_custom_call.1} parent=5 // pred_check_branch
        %120 = sbr.rel (%p118) target = $region20
      $region19: #{tpu_custom_call.1} parent=5 // pred_region
        // Predicated region
        $region21: #{tpu_custom_call.1} parent=19 // pred_check
          %p121 = pneg %p35
        $region22: #{tpu_custom_call.1} parent=19 // pred_check_branch
          %123 = sbr.rel (%p121) target = $region24
        $region23: #{tpu_custom_call.1} parent=19 // pred_region
          %s124 = sand.u32 %s25, 1
          %s125 = scalar_lea.sflag [#allocation3], %s124
          %s126 = sand.u32 %s25, 1
          %s127 = smul.addr %s126, 64
          %s128 = scalar_lea.vmem [#allocation2], %s127
          %s129 = smul.u32 8, %s15
          %131 = vsyncadd %s125, 0
          %s132 = smul.addr %s129, 8
          %s133 = scalar_lea.hbm %s0, %s132
          %s134 = sshll.u32 %s133, 4
          %s135 = int_to_ptr.hbm [resolvable:$true] %s134
          %s136 = sshll.u32 %s128, 4
          %s137 = int_to_ptr.vmem [resolvable:$true] %s136
          %142 = dma.hbm_to_vmem [thread:$0]  %s135, 1024, %s137, %s125, 128, 128, 8
        $region24: #{tpu_custom_call.1} parent=19 // pred_fallthru
          _
      $region20: #{tpu_custom_call.1} parent=5 // pred_fallthru
        _
      %p143 = scmp.le.s32.totalorder 1, %s15
      %p144 = scmp.lt.s32.totalorder %s15, 3
      %p145 = pnand %p143, %p144
      %p146 = pneg %p145
      // Predicated region
      $region25: #{tpu_custom_call.1} parent=5 // pred_check
        _
      $region26: #{tpu_custom_call.1} parent=5 // pred_check_branch
        %148 = sbr.rel (%p145) target = $region28
      $region27: #{tpu_custom_call.1} parent=5 // pred_region
        %s149 = ssub.s32 %s15, 1
        %s150 = sand.u32 %s28, 1
        %s151 = scalar_lea.sflag [#allocation3], %s150
        %s152 = sand.u32 %s28, 1
        %s153 = smul.addr %s152, 64
        %s154 = scalar_lea.vmem [#allocation2], %s153
        // Predicated region
        $region29: #{tpu_custom_call.1} parent=27 // pred_check
          %p155 = pneg %p41
        $region30: #{tpu_custom_call.1} parent=27 // pred_check_branch
          %157 = sbr.rel (%p155) target = $region32
        $region31: #{tpu_custom_call.1} parent=27 // pred_region
          %159 = dma.done %s151, 1024
        $region32: #{tpu_custom_call.1} parent=27 // pred_fallthru
          _
        // Predicated region
        $region33: #{tpu_custom_call.1} parent=27 // pred_check
          %p160 = pneg %p62
        $region34: #{tpu_custom_call.1} parent=27 // pred_check_branch
          %162 = sbr.rel (%p160) target = $region36
        $region35: #{tpu_custom_call.1} parent=27 // pred_region
          %164 = dma.done [#allocation6], 1024
        $region36: #{tpu_custom_call.1} parent=27 // pred_fallthru
          _
        %s165 = sand.u32 %s28, 1
        %s166 = scalar_lea.sflag [#allocation3], %s165
        %s167 = sand.u32 %s28, 1
        %s168 = smul.addr %s167, 64
        %s169 = scalar_lea.vmem [#allocation2], %s168
        %p170 = pneg %p41
        %p171 = pneg %p38
        %p172 = pneg %p62
        %p173 = pneg %p59
        %p174 = pneg %p88
        %p175 = pneg %p85
        %s176 = sand.u32 %s75, 1
        %s177 = scalar_lea.sflag [#allocation4], %s176
        %s178 = sand.u32 %s75, 1
        %s179 = smul.addr %s178, 32
        %s180 = scalar_lea.vmem [#allocation7], %s179
        %s181 = smul.u32 8, %s20
        %s182 = smul.u32 8, %s20
        %v183 = vld [vmem:[%s154] sm:$0xff]
        %v184 = vld [vmem:[%s154 + $0x8] sm:$0xff]
        %v185 = vld [vmem:[%s154 + $0x10] sm:$0xff]
        %v186 = vld [vmem:[%s154 + $0x18] sm:$0xff]
        %v187 = vld [vmem:[%s154 + $0x20] sm:$0xff]
        %v188 = vld [vmem:[%s154 + $0x28] sm:$0xff]
        %v189 = vld [vmem:[%s154 + $0x30] sm:$0xff]
        %v190 = vld [vmem:[%s154 + $0x38] sm:$0xff]
        %v191 = vpack.c.bf16 %v184, %v183
        %v192 = vpack.c.bf16 %v186, %v185
        %v193 = vpack.c.bf16 %v188, %v187
        %v194 = vpack.c.bf16 %v190, %v189
        %v195 = vld [vmem:[#allocation5] sm:$0xf]
        %v196 = vld [vmem:[#allocation5 + $0x4] sm:$0xf]
        %v197 = vld [vmem:[#allocation5 + $0x8] sm:$0xf]
        %v198 = vld [vmem:[#allocation5 + $0xc] sm:$0xf]
        %v199 = vld [vmem:[#allocation5 + $0x10] sm:$0xf]
        %v200 = vld [vmem:[#allocation5 + $0x14] sm:$0xf]
        %v201 = vld [vmem:[#allocation5 + $0x18] sm:$0xf]
        %v202 = vld [vmem:[#allocation5 + $0x1c] sm:$0xf]
        %v203 = vld [vmem:[#allocation5 + $0x20] sm:$0xf]
        %v204 = vld [vmem:[#allocation5 + $0x24] sm:$0xf]
        %v205 = vld [vmem:[#allocation5 + $0x28] sm:$0xf]
        %v206 = vld [vmem:[#allocation5 + $0x2c] sm:$0xf]
        %v207 = vld [vmem:[#allocation5 + $0x30] sm:$0xf]
        %v208 = vld [vmem:[#allocation5 + $0x34] sm:$0xf]
        %v209 = vld [vmem:[#allocation5 + $0x38] sm:$0xf]
        %v210 = vld [vmem:[#allocation5 + $0x3c] sm:$0xf]
        %v227 = vunpack.c.l.b16 %v195
        %v228 = vunpack.c.l.b16 %v196
        %v229 = vunpack.c.l.b16 %v197
        %v230 = vunpack.c.l.b16 %v198
        %v231 = vunpack.c.l.b16 %v199
        %v232 = vunpack.c.l.b16 %v200
        %v233 = vunpack.c.l.b16 %v201
        %v234 = vunpack.c.l.b16 %v202
        %v235 = vunpack.c.l.b16 %v203
        %v236 = vunpack.c.l.b16 %v204
        %v237 = vunpack.c.l.b16 %v205
        %v238 = vunpack.c.l.b16 %v206
        %v239 = vunpack.c.l.b16 %v207
        %v240 = vunpack.c.l.b16 %v208
        %v241 = vunpack.c.l.b16 %v209
        %v242 = vunpack.c.l.b16 %v210
        %v243 = vpack.c.b16 %v228, %v227
        %v244 = vpack.c.b16 %v230, %v229
        %v245 = vpack.c.b16 %v232, %v231
        %v246 = vpack.c.b16 %v234, %v233
        %v247 = vpack.c.b16 %v236, %v235
        %v248 = vpack.c.b16 %v238, %v237
        %v249 = vpack.c.b16 %v240, %v239
        %v250 = vpack.c.b16 %v242, %v241
        %259 = vmatpush.bf16.msra.mxu0 %v250
        %260 = vmatpush.bf16.msra.mxu0 %v249
        %261 = vmatpush.bf16.msra.mxu0 %v248
        %262 = vmatpush.bf16.msra.mxu0 %v247
        %263 = vmatpush.bf16.msra.mxu0 %v246
        %264 = vmatpush.bf16.msra.mxu0 %v245
        %265 = vmatpush.bf16.msra.mxu0 %v244
        %266 = vmatpush.bf16.msra.mxu0 %v243
        %267 = vmatmul.bf16.gmra.mxu0 %v191
        %v268 = vpop.f32.mrf.mxu0
        %v269 = vadd.f32 0.0, %v268
        %v270 = vpop.f32.mrf.mxu0
        %v271 = vadd.f32 0.0, %v270
        %272 = vmatmul.bf16.gmra.mxu0 %v192
        %v273 = vpop.f32.mrf.mxu0
        %v274 = vadd.f32 0.0, %v273
        %v275 = vpop.f32.mrf.mxu0
        %v276 = vadd.f32 0.0, %v275
        %277 = vmatmul.bf16.gmra.mxu0 %v193
        %v278 = vpop.f32.mrf.mxu0
        %v279 = vadd.f32 0.0, %v278
        %v280 = vpop.f32.mrf.mxu0
        %v281 = vadd.f32 0.0, %v280
        %282 = vmatmul.bf16.gmra.mxu0 %v194
        %v283 = vpop.f32.mrf.mxu0
        %v284 = vadd.f32 0.0, %v283
        %v285 = vpop.f32.mrf.mxu0
        %v286 = vadd.f32 0.0, %v285
        %287 = vdwg.mxu0
        %v288 = vpack.c.bf16 %v269, %v269
        %v289 = vpack.c.bf16 %v271, %v271
        %v290 = vpack.c.bf16 %v274, %v274
        %v291 = vpack.c.bf16 %v276, %v276
        %v292 = vpack.c.bf16 %v279, %v279
        %v293 = vpack.c.bf16 %v281, %v281
        %v294 = vpack.c.bf16 %v284, %v284
        %v295 = vpack.c.bf16 %v286, %v286
        %296 = vst [vmem:[%s180] sm:$0xf] %v288
        %297 = vst [vmem:[%s180 + $0x4] sm:$0xf] %v289
        %298 = vst [vmem:[%s180 + $0x8] sm:$0xf] %v290
        %299 = vst [vmem:[%s180 + $0xc] sm:$0xf] %v291
        %300 = vst [vmem:[%s180 + $0x10] sm:$0xf] %v292
        %301 = vst [vmem:[%s180 + $0x14] sm:$0xf] %v293
        %302 = vst [vmem:[%s180 + $0x18] sm:$0xf] %v294
        %303 = vst [vmem:[%s180 + $0x1c] sm:$0xf] %v295
        %s304 = sand.u32 %s75, 1
        %s305 = scalar_lea.sflag [#allocation4], %s304
        %s306 = sand.u32 %s75, 1
        %s307 = smul.addr %s306, 32
        %s308 = scalar_lea.vmem [#allocation7], %s307
        // Predicated region
        $region37: #{tpu_custom_call.1} parent=27 // pred_check
          %p309 = pneg %p85
        $region38: #{tpu_custom_call.1} parent=27 // pred_check_branch
          %311 = sbr.rel (%p309) target = $region40
        $region39: #{tpu_custom_call.1} parent=27 // pred_region
          %s312 = smul.u32 8, %s20
          %314 = vsyncadd %s305, 0
          %s315 = smul.addr %s312, 4
          %s316 = scalar_lea.hbm %s2, %s315
          %s317 = sshll.u32 %s308, 4
          %s318 = int_to_ptr.vmem [resolvable:$true] %s317
          %s319 = sshll.u32 %s316, 4
          %s320 = int_to_ptr.hbm [resolvable:$true] %s319
          %325 = dma.vmem_to_hbm [thread:$0]  %s318, 512, %s320, %s305, 64, 64, 4
        $region40: #{tpu_custom_call.1} parent=27 // pred_fallthru
          _
      $region28: #{tpu_custom_call.1} parent=5 // pred_fallthru
        _
      %p326 = scmp.le.s32.totalorder 2, %s15
      // Predicated region
      $region41: #{tpu_custom_call.1} parent=5 // pred_check
        %p327 = pneg %p326
      $region42: #{tpu_custom_call.1} parent=5 // pred_check_branch
        %329 = sbr.rel (%p327) target = $region44
      $region43: #{tpu_custom_call.1} parent=5 // pred_region
        %s330 = ssub.s32 %s15, 2
        // Predicated region
        $region45: #{tpu_custom_call.1} parent=43 // pred_check
          %p331 = pneg %p91
        $region46: #{tpu_custom_call.1} parent=43 // pred_check_branch
          %333 = sbr.rel (%p331) target = $region48
        $region47: #{tpu_custom_call.1} parent=43 // pred_region
          %s334 = sand.u32 %s76, 1
          %s335 = scalar_lea.sflag [#allocation4], %s334
          %s336 = sand.u32 %s76, 1
          %s337 = smul.addr %s336, 32
          %s338 = scalar_lea.vmem [#allocation7], %s337
          %340 = dma.done %s335, 512
        $region48: #{tpu_custom_call.1} parent=43 // pred_fallthru
          _
      $region44: #{tpu_custom_call.1} parent=5 // pred_fallthru
        _
    $region6: #{tpu_custom_call.1} parent=1 // loop_footer
      %s19 = sadd.s32 1, %s15
    $region7: #{tpu_custom_call.1} parent=1 // loop_footer_branch
      %14 = sbr.rel target = $region3
    $region8: #{tpu_custom_call.1} parent=1 // loop_exit
      _
    %341 = vsyncpa [#allocation3], 1
    %s342 = scalar_lea.sflag [#allocation3], 1
    %343 = vsyncpa %s342, 1
    %344 = vsyncpa [#allocation6], 1
    %345 = vsyncpa [#allocation4], 1
    %s346 = scalar_lea.sflag [#allocation4], 1
    %347 = vsyncpa %s346, 1

</llo_original>
